<compile_context>
chip_gen: v5e
topology: v5e:2x2
jax: 0.10.0
libtpu: 0.0.40
codegen_flags: <defaults>
</compile_context>

<pallas_src>
from collections import OrderedDict

import jax
import jax.numpy as jnp
from jax.experimental import pallas as pl
from jax.experimental.pallas import tpu as pltpu

NUM_TASKS = 4
_ROWS = 8  # sublane-friendly row count (>= number of tasks)


# ---------------------------------------------------------------------------
# Pallas kernel: single (8, 2) input tile -> (8, 1) output column.
# ---------------------------------------------------------------------------
def _awl_kernel(packed_ref, out_ref):
    # packed_ref: (8, 2) f32 ; col 0 = params, col 1 = pre-reduced loss sums.
    # out_ref:    (8, 1) f32
    x = packed_ref[...]
    p = x[:, 0:1]
    s = x[:, 1:2]
    p2 = p * p
    # exact reciprocal (approx=False) so the forward matches PyTorch numerics.
    out_ref[...] = 0.5 * pl.reciprocal(p2) * s + jnp.log(1.0 + p2)


def _awl_pallas(packed_tile):
    rows = packed_tile.shape[0]
    return pl.pallas_call(
        _awl_kernel,
        out_shape=jax.ShapeDtypeStruct((rows, 1), jnp.float32),
        # Gridless call: whole arrays land in VMEM as single blocks
        # (full-array block => exempt from the (8, 128) divisibility rule).
        in_specs=[pl.BlockSpec(memory_space=pltpu.MemorySpace.VMEM)],
        out_specs=pl.BlockSpec(memory_space=pltpu.MemorySpace.VMEM),
        # Tell the XLA scheduler this custom call is negligible.
        cost_estimate=pl.CostEstimate(flops=40, transcendentals=16,
                                      bytes_accessed=200),
    )(packed_tile)


# ---------------------------------------------------------------------------
# custom_vjp so jax.grad works through the learnable params (PyTorch parity).
# Forward = Pallas kernel; backward = cheap analytic jnp.
# ---------------------------------------------------------------------------
@jax.custom_vjp
def _awl_core(params_col, loss_col):
    # params_col, loss_col: (_ROWS, 1) f32
    packed = jnp.concatenate([params_col, loss_col], axis=1)      # (_ROWS, 2)
    return _awl_pallas(packed)                                    # (_ROWS, 1)


def _awl_core_fwd(params_col, loss_col):
    return _awl_core(params_col, loss_col), (params_col, loss_col)


def _awl_core_bwd(residuals, g):
    p, L = residuals
    p2 = p * p
    # d/dp [0.5/p^2 * L + log(1+p^2)] = -L/p^3 + 2p/(1+p^2)
    d_params = g * (-L / (p2 * p) + 2.0 * p / (1.0 + p2))
    # d/dL = 0.5/p^2
    d_loss = g * (0.5 / p2)
    return d_params, d_loss


_awl_core.defvjp(_awl_core_fwd, _awl_core_bwd)


# ---------------------------------------------------------------------------
# Single-dispatch forward: packing + reduce + kernel + unpack under one jit.
# ---------------------------------------------------------------------------
@jax.jit
def _awl_forward(params, loss_terms):
    """params: (num,) f32. loss_terms: tuple (per task) of tuples of scalar losses.

    The pytree structure of `loss_terms` is static under jit, so packing, the
    pre-reduction, the pallas_call and the per-task scalar extraction all fuse
    into one XLA program.
    """
    num = len(loss_terms)

    # Pre-reduce per-task loss sums on the host-side trace (fused by XLA);
    # the kernel then does pure VPU/EUP math on a single 64 B tile.
    loss_sums = jnp.stack([
        jnp.sum(jnp.stack([jnp.asarray(t, jnp.float32).reshape(()) for t in terms]))
        for terms in loss_terms
    ])                                                            # (num,)

    # Pad to the 8-sublane tile. Padded param rows = 1.0 keeps 1/p^2 finite.
    params_col = jax.lax.dynamic_update_slice(
        jnp.ones((_ROWS, 1), jnp.float32),
        params.astype(jnp.float32).reshape(num, 1), (0, 0))
    loss_col = jax.lax.dynamic_update_slice(
        jnp.zeros((_ROWS, 1), jnp.float32),
        loss_sums.reshape(num, 1), (0, 0))

    out_col = _awl_core(params_col, loss_col)                     # (8, 1)
    weighted = out_col[:num, 0]                                   # (num,)
    # Split into per-task scalars *inside* the jit -> still a single dispatch.
    return tuple(weighted[i] for i in range(num))


class AutomaticWeightedLoss:
    """JAX/Pallas port of the PyTorch AutomaticWeightedLoss module."""

    def __init__(self, num=NUM_TASKS):
        self.num = num
        # torch.ones(num) parameter init, deterministic.
        self.params = jnp.ones((num,), dtype=jnp.float32)

    def __str__(self) -> str:
        return " | ".join(f"param_{i}: {p}" for i, p in enumerate(self.params))

    def __call__(self, total_losses: "OrderedDict[str, dict]") -> OrderedDict:
        keys = list(total_losses.keys())
        assert len(keys) <= min(self.num, _ROWS), "too many tasks for this kernel"

        # NOTE: each scalar loss arrives as its own device buffer (dictated by
        # the module interface); callers that can pre-pack a (num,) loss-sum
        # array should call _awl_forward-style code directly to avoid the
        # per-buffer argument plumbing.
        loss_terms = tuple(tuple(total_losses[k].values()) for k in keys)
        weighted = _awl_forward(self.params[: len(keys)], loss_terms)

        return OrderedDict(("awl_" + k, w) for k, w in zip(keys, weighted))


def _reference(params, total_losses):
    # Pure-JAX reference mirroring the PyTorch forward exactly.
    out = OrderedDict()
    for i, (k, v) in enumerate(total_losses.items()):
        losses = sum(list(v.values()))
        out["awl_" + k] = 0.5 / params[i] ** 2 * losses + jnp.log(1 + params[i] ** 2)
    return out


if __name__ == "__main__":
    key = jax.random.PRNGKey(0)

    # Deterministic synthetic per-task loss dictionaries (scalar losses), 4 tasks.
    task_spec = OrderedDict(
        [("clf", ["ce", "aux"]), ("det", ["cls", "box", "obj"]),
         ("seg", ["ce"]), ("depth", ["l1", "grad"])]
    )
    total_losses = OrderedDict()
    for tname, lnames in task_spec.items():
        sub = OrderedDict()
        for ln in lnames:
            key, sub_key = jax.random.split(key)
            sub[ln] = jax.random.uniform(sub_key, (), dtype=jnp.float32,
                                         minval=0.1, maxval=2.0)
        total_losses[tname] = sub

    awl = AutomaticWeightedLoss(num=NUM_TASKS)
    out = awl(total_losses)
    jax.block_until_ready(list(out.values()))

    # Forward parity vs. pure-JAX reference of the PyTorch expression.
    ref = _reference(awl.params, total_losses)
    for k in out:
        assert jnp.allclose(out[k], ref[k], rtol=1e-5, atol=1e-5), (k, out[k], ref[k])

    # Gradient check w.r.t. the learnable params (custom_vjp backward).
    loss_terms = tuple(tuple(v.values()) for v in total_losses.values())

    def total_awl(p):
        return sum(_awl_forward(p, loss_terms))

    def total_ref(p):
        sums = jnp.stack([sum(list(v.values())) for v in total_losses.values()])
        return jnp.sum(0.5 / p ** 2 * sums + jnp.log(1 + p ** 2))

    g_kernel = jax.grad(total_awl)(awl.params)
    g_ref = jax.grad(total_ref)(awl.params)
    jax.block_until_ready(g_kernel)
    assert jnp.allclose(g_kernel, g_ref, rtol=1e-5, atol=1e-5), (g_kernel, g_ref)

    print("KERNEL_OK")
</pallas_src>

<mosaic_0001>
module attributes {stable_mosaic.version = 11 : i64} {
  func.func @_awl_kernel(%arg0: memref<8x2xf32, #tpu.memory_space<vmem>>, %arg1: memref<8x1xf32, #tpu.memory_space<vmem>>) attributes {dimension_semantics = [], scalar_prefetch = 0 : i64, scratch_operands = 0 : i64, tpu.core_type = #tpu.core_type<tc>} {
    %c0 = arith.constant 0 : index
    %c0_0 = arith.constant 0 : index
    %0 = vector.load %arg0[%c0, %c0_0] : memref<8x2xf32, #tpu.memory_space<vmem>>, vector<8x2xf32>
    %1 = vector.extract_strided_slice %0 {offsets = [0, 0], sizes = [8, 1], strides = [1, 1]} : vector<8x2xf32> to vector<8x1xf32>
    %2 = vector.extract_strided_slice %0 {offsets = [0, 1], sizes = [8, 1], strides = [1, 1]} : vector<8x2xf32> to vector<8x1xf32>
    %3 = arith.mulf %1, %1 : vector<8x1xf32>
    %4 = tpu.reciprocal %3 : vector<8x1xf32> -> vector<8x1xf32>
    %cst = arith.constant 5.000000e-01 : f32
    %5 = vector.broadcast %cst : f32 to vector<8x1xf32>
    %6 = arith.mulf %5, %4 : vector<8x1xf32>
    %7 = arith.mulf %6, %2 : vector<8x1xf32>
    %cst_1 = arith.constant 1.000000e+00 : f32
    %8 = vector.broadcast %cst_1 : f32 to vector<8x1xf32>
    %9 = arith.addf %8, %3 : vector<8x1xf32>
    %10 = math.log %9 : vector<8x1xf32>
    %11 = arith.addf %7, %10 : vector<8x1xf32>
    %c0_2 = arith.constant 0 : index
    %c0_3 = arith.constant 0 : index
    %12 = vector.load %arg1[%c0_2, %c0_3] : memref<8x1xf32, #tpu.memory_space<vmem>>, vector<8x1xf32>
    tpu.vector_store %arg1[%c0_2, %c0_3], %11 {strides = array<i32>} : memref<8x1xf32, #tpu.memory_space<vmem>>, vector<8x1xf32>,
    return
  }
}

</mosaic_0001>

<llo_original>
// kernel: _awl_forward.1
$region0: #{_awl_forward.1}
  #allocation0 [shape = 'u32[]', space=smem, size = 0x4, offset = 0x4, fixed_abs, tag = 'smem constant byte address 0x4 - core index']
  #allocation1 [shape = 'u32[72,128]{1,0:T(1,128)}', space=vmem, size = 0x9000, scoped, tag = 'internal scratch']
  %s0 = inlined_call_operand.vmem [shape: f32[8,2], index: 0, kind: input, shape index: {}]
  %s1 = inlined_call_operand.vmem [shape: f32[8,1], index: 1, kind: output, shape index: {}]
  %s2 = sld [smem:[#allocation0]]
  $region14: #{_awl_forward.1} parent=0
    _
  %s4 = ssub.s32 1, %s2
  %s5 = scalar_select 0, %s4, %s2
  // Predicated region
  $region2: #{_awl_forward.1} parent=0 // pred_check
    _
  $region3: #{_awl_forward.1} parent=0 // pred_check_branch
    %7 = sbr.rel (0) target = $region5
  $region4: #{_awl_forward.1} parent=0 // pred_region
    _
  $region5: #{_awl_forward.1} parent=0 // pred_fallthru
    _
  %v8 = vld [vmem:[%s0] sm:$0xff]
  %v9 = vmul.f32 %v8, %v8
  %v10 = vrcp.pop %v9
  %v11 = vmul.f32 %v9, %v10
  %v12 = vsub.f32 1.0, %v11
  %v13 = vmul.f32 %v10, %v12
  %v14 = vadd.f32 %v10, %v13
  %vm15 = vweird.f32 %v9
  %vm16 = vweird.f32 %v10
  %vm17 = vmor %vm15, %vm16
  %v18 = vsel %vm17, %v10, %v14
  %v19 = vand.u32 2147483647, %v9
  %vm20 = vcmp.eq.f32.partialorder %v19, 8.507059e+37
  %v21 = vand.u32 %v9, 2147483648
  %v22 = vor.u32 1.1754944e-38, %v21
  %v23 = vsel %vm20, %v22, %v18
  %v24 = vmul.f32 %v23, 0.5
  %26 = vrot.lane.b32.xlu0 %v8, 127
  %v27 = vpop.permute.xlu0 %26
  %v29 = vmul.f32 %v24, %v27
  %v30 = vadd.f32 %v9, 1.0
  %v31 = vlog2.pop %v30
  %v32 = vmul.f32 %v31, 0.6931472
  %v33 = vadd.f32 %v29, %v32
  %vm34 = vcmask 7168
  %35 = vst.msk [vmem:[%s1] sm:$0xff] %vm34, %v33
  // Predicated region
  $region6: #{_awl_forward.1} parent=0 // pred_check
    _
  $region7: #{_awl_forward.1} parent=0 // pred_check_branch
    %37 = sbr.rel (0) target = $region9
  $region8: #{_awl_forward.1} parent=0 // pred_region
    _
  $region9: #{_awl_forward.1} parent=0 // pred_fallthru
    _
  // Predicated region
  $region10: #{_awl_forward.1} parent=0 // pred_check
    _
  $region11: #{_awl_forward.1} parent=0 // pred_check_branch
    %39 = sbr.rel (0) target = $region13
  $region12: #{_awl_forward.1} parent=0 // pred_region
    _
  $region13: #{_awl_forward.1} parent=0 // pred_fallthru
    _

</llo_original>
